<compile_context>
chip_gen: v5e
topology: v5e:2x2
jax: 0.10.0
libtpu: 0.0.40
codegen_flags: <defaults>
</compile_context>

<pallas_src>
import numpy as np
import jax
import jax.numpy as jnp
from jax.experimental import pallas as pl
from jax.experimental.pallas import tpu as pltpu


# ----------------------------- Pallas kernel --------------------------------
def posatt5_kernel(x_ref, y_ref, wx_ref, wy_ref, pw1_ref, b1_ref,
                   w2u_ref, b2u_ref, rep_ref, out_ref):
    hw = out_ref.shape[1]
    x = x_ref[...].astype(jnp.float32)          # (bb*C, HW)
    y = y_ref[...].astype(jnp.float32)          # (bb*C, HW)

    # 1x1 Conv(2C -> 1) + BN2d(1), commuted in front of the pooling: one
    # block-diagonal channel-reduce matmul per input.
    s = (jnp.dot(wx_ref[...], x, preferred_element_type=jnp.float32)
         + jnp.dot(wy_ref[...], y, preferred_element_type=jnp.float32))   # (bb, HW)

    # AdaptiveAvgPool((d,d)) + fc1 + BN1d folded into one (HW, int_n) operator.
    h1 = jnp.maximum(
        jnp.dot(s, pw1_ref[...], preferred_element_type=jnp.float32) + b1_ref[...],
        0.0)                                                                # (bb, int_n)

    # fc2 + bilinear upsample (align_corners=True) folded into (int_n, 2*HW).
    logits = (jnp.dot(h1, w2u_ref[...], preferred_element_type=jnp.float32)
              + b2u_ref[...])                                               # (bb, 2*HW)

    # Softmax over the 2 attention channels (lane slices at a 128 multiple).
    a0 = logits[:, :hw]
    a1 = logits[:, hw:]
    mx = jnp.maximum(a0, a1)
    e0 = jnp.exp(a0 - mx)
    e1 = jnp.exp(a1 - mx)
    inv = pl.reciprocal(e0 + e1, approx=True)
    att0 = e0 * inv                                                         # (bb, HW)
    att1 = e1 * inv

    # Broadcast per-batch attention rows to the (batch*channel) rows via a
    # tiny replication matmul, then blend.
    A0 = jnp.dot(rep_ref[...], att0, preferred_element_type=jnp.float32)    # (bb*C, HW)
    A1 = jnp.dot(rep_ref[...], att1, preferred_element_type=jnp.float32)
    out_ref[...] = (x * A0 + y * A1).astype(out_ref.dtype)


def posatt5_pallas(x, y, folded, batches_per_step=None):
    B, C, H, W = x.shape
    assert H == W, "PosAtt5 requires square spatial inputs (module swaps w/h)"
    HW = H * W
    assert HW % 128 == 0, "H*W must be a multiple of 128 (pad spatially on host)"

    bb = B if batches_per_step is None else batches_per_step
    assert B % bb == 0
    row_blk = bb * C
    assert row_blk % 8 == 0 or bb == B

    x2 = x.reshape(B * C, HW)
    y2 = y.reshape(B * C, HW)
    Wx, Wy, PW1, bias1, W2U, b2u, R = (
        folded[k] for k in ("Wx", "Wy", "PW1", "bias1", "W2U", "b2u", "R"))
    assert Wx.shape == (bb, row_blk)

    const = lambda shp: pl.BlockSpec(shp, lambda i: (0, 0))
    out = pl.pallas_call(
        posatt5_kernel,
        out_shape=jax.ShapeDtypeStruct((B * C, HW), x.dtype),
        grid_spec=pltpu.PrefetchScalarGridSpec(
            num_scalar_prefetch=0,
            grid=(B // bb,),
            in_specs=[
                pl.BlockSpec((row_blk, HW), lambda i: (i, 0)),
                pl.BlockSpec((row_blk, HW), lambda i: (i, 0)),
                const(Wx.shape), const(Wy.shape), const(PW1.shape),
                const(bias1.shape), const(W2U.shape), const(b2u.shape),
                const(R.shape),
            ],
            out_specs=pl.BlockSpec((row_blk, HW), lambda i: (i, 0)),
        ),
        compiler_params=pltpu.CompilerParams(
            dimension_semantics=("parallel",)),
    )(x2, y2, Wx, Wy, PW1, bias1, W2U, b2u, R)
    return out.reshape(B, C, H, W)


# ------------------------- host-side operators / folding --------------------
def adaptive_avg_pool_matrix(out_size, in_size):
    """P (out_size, in_size): PyTorch AdaptiveAvgPool along one axis."""
    P = np.zeros((out_size, in_size), dtype=np.float32)
    for i in range(out_size):
        start = (i * in_size) // out_size
        end = -(-((i + 1) * in_size) // out_size)  # ceil
        P[i, start:end] = 1.0 / (end - start)
    return P


def bilinear_upsample_matrix(out_size, in_size):
    """U (out_size, in_size): bilinear, align_corners=True, along one axis."""
    U = np.zeros((out_size, in_size), dtype=np.float32)
    if in_size == 1:
        U[:, 0] = 1.0
        return U
    for j in range(out_size):
        pos = j * (in_size - 1) / (out_size - 1) if out_size > 1 else 0.0
        i0 = min(int(np.floor(pos)), in_size - 1)
        i1 = min(i0 + 1, in_size - 1)
        frac = pos - i0
        U[j, i0] += 1.0 - frac
        U[j, i1] += frac
    return U


def make_params(in_ch, d, int_n, key):
    """Raw PosAtt5 parameters (deterministic); BN buffers at eval defaults."""
    ks = jax.random.split(key, 6)
    dd = d * d
    return dict(
        wf=jax.random.normal(ks[0], (2 * in_ch,), jnp.float32) * 0.1,   # Conv2d(2C,1,1)
        b_conv=jax.random.normal(ks[1], (), jnp.float32) * 0.1,
        bn2_g=jnp.float32(1.0), bn2_b=jnp.float32(0.0),
        bn2_mu=jnp.float32(0.0), bn2_var=jnp.float32(1.0),
        W1=jax.random.normal(ks[2], (int_n, dd), jnp.float32) * 0.1,     # Linear(dd,int_n)
        b1=jax.random.normal(ks[3], (int_n,), jnp.float32) * 0.1,
        bn1_g=jnp.ones((int_n,), jnp.float32), bn1_b=jnp.zeros((int_n,), jnp.float32),
        bn1_mu=jnp.zeros((int_n,), jnp.float32), bn1_var=jnp.ones((int_n,), jnp.float32),
        W2=jax.random.normal(ks[4], (2 * dd, int_n), jnp.float32) * 0.1,  # Linear(int_n,2dd)
        b2=jax.random.normal(ks[5], (2 * dd,), jnp.float32) * 0.1,
    )


def fold_params(raw, C, H, W, d, bb):
    """Fold BN + pool + upsample into the surrounding linear layers."""
    eps = 1e-5
    wf = np.asarray(raw["wf"], np.float32)
    b_conv = float(raw["b_conv"])
    g1, be1, mu1, v1 = (float(raw[k]) for k in ("bn2_g", "bn2_b", "bn2_mu", "bn2_var"))
    W1 = np.asarray(raw["W1"], np.float32)
    b1 = np.asarray(raw["b1"], np.float32)
    g2, be2, mu2, v2 = (np.asarray(raw[k], np.float32)
                        for k in ("bn1_g", "bn1_b", "bn1_mu", "bn1_var"))
    W2 = np.asarray(raw["W2"], np.float32)
    b2 = np.asarray(raw["b2"], np.float32)

    HW, dd = H * W, d * d
    # Separable pool / upsample factors — thin (dd, HW) / (HW, dd), never (HW, HW).
    P_h = adaptive_avg_pool_matrix(d, H)
    P_w = adaptive_avg_pool_matrix(d, W)
    U_h = bilinear_upsample_matrix(H, d)
    U_w = bilinear_upsample_matrix(W, d)
    PoolT = np.kron(P_h, P_w).T                    # (HW, dd)
    UpT = np.kron(U_h, U_w).T                      # (dd, HW)

    # Fold BN2d(1) into the 1x1 conv (pooling commutes with the channel mix).
    s1 = g1 / np.sqrt(v1 + eps)
    wf_f = s1 * wf
    cb = s1 * (b_conv - mu1) + be1                 # constant at every pooled position

    # Fold BN1d into fc1, then fuse the pooling operator into fc1.
    s2 = g2 / np.sqrt(v2 + eps)
    W1_f = W1 * s2[:, None]
    b1_f = s2 * (b1 - mu2) + be2
    PW1 = PoolT @ W1_f.T                           # (HW, int_n)
    bias1 = b1_f + cb * W1_f.sum(axis=1)           # (int_n,)

    # Fuse the bilinear upsample into fc2 (one column block per attention chan).
    W2U = np.concatenate([W2[:dd].T @ UpT, W2[dd:].T @ UpT], axis=1)   # (int_n, 2*HW)
    b2u = np.concatenate([b2[:dd] @ UpT, b2[dd:] @ UpT])[None, :]      # (1, 2*HW)

    # Block-diagonal channel-reduce weights and per-batch replication matrix
    # for the (bb*C, HW) row layout (row index = local_batch * C + channel).
    Wx = np.zeros((bb, bb * C), np.float32)
    Wy = np.zeros((bb, bb * C), np.float32)
    R = np.zeros((bb * C, bb), np.float32)
    for b in range(bb):
        Wx[b, b * C:(b + 1) * C] = wf_f[:C]
        Wy[b, b * C:(b + 1) * C] = wf_f[C:]
        R[b * C:(b + 1) * C, b] = 1.0

    to = lambda a: jnp.asarray(a, jnp.float32)
    return dict(Wx=to(Wx), Wy=to(Wy), PW1=to(PW1), bias1=to(bias1[None, :]),
                W2U=to(W2U), b2u=to(b2u), R=to(R))


# ------------------------------ pure-JAX reference --------------------------
def posatt5_ref(x, y, raw, d):
    """Op-by-op PosAtt5 forward (eval-mode BN), unfused — validates the folding."""
    eps = 1e-5
    B, C, H, W = x.shape
    m = jnp.concatenate([x, y], axis=1)                               # (B, 2C, H, W)
    P_h = jnp.asarray(adaptive_avg_pool_matrix(d, H))
    P_w = jnp.asarray(adaptive_avg_pool_matrix(d, W))
    pooled = jnp.einsum('ih,bchw,jw->bcij', P_h, m, P_w)              # AdaptiveAvgPool2d
    t = jnp.einsum('c,bcij->bij', raw["wf"], pooled) + raw["b_conv"]  # Conv2d(2C->1,1x1)
    s1 = raw["bn2_g"] / jnp.sqrt(raw["bn2_var"] + eps)
    t = s1 * (t - raw["bn2_mu"]) + raw["bn2_b"]                       # BatchNorm2d(1)
    v = t.reshape(B, d * d)
    h = v @ raw["W1"].T + raw["b1"]                                   # fc1
    s2 = raw["bn1_g"] / jnp.sqrt(raw["bn1_var"] + eps)
    h = s2 * (h - raw["bn1_mu"]) + raw["bn1_b"]                       # BatchNorm1d
    h = jnp.maximum(h, 0.0)                                           # ReLU
    z = h @ raw["W2"].T + raw["b2"]                                   # fc2
    z = z.reshape(B, 2, d, d)
    U_h = jnp.asarray(bilinear_upsample_matrix(H, d))
    U_w = jnp.asarray(bilinear_upsample_matrix(W, d))
    zu = jnp.einsum('hi,bkij,wj->bkhw', U_h, z, U_w)                  # bilinear up
    att = jax.nn.softmax(zu, axis=1)
    return x * att[:, :1] + y * att[:, 1:]


if __name__ == "__main__":
    B, C, H, W = 2, 4, 16, 16
    r_param, w_param = 10, W                 # PosAtt5(in_ch=C, r=10, w=W)
    d = min(15, w_param // 3)                # 5
    int_n = max(d * d // r_param, 20)        # 20

    key = jax.random.PRNGKey(0)
    kx, ky, kp = jax.random.split(key, 3)
    x = jax.random.normal(kx, (B, C, H, W), jnp.float32)
    y = jax.random.normal(ky, (B, C, H, W), jnp.float32)

    raw = make_params(C, d, int_n, kp)
    folded = fold_params(raw, C, H, W, d, bb=B)

    out = posatt5_pallas(x, y, folded)
    out = jax.block_until_ready(out)

    ref = posatt5_ref(x, y, raw, d)
    assert out.shape == (B, C, H, W)
    # 5e-3 tolerance absorbs the EUP approximate-reciprocal softmax in the
    # kernel; a folding bug would produce errors orders of magnitude larger.
    if not jnp.allclose(out, ref, atol=5e-3, rtol=5e-3):
        raise AssertionError(
            "Pallas kernel does not match reference (max abs diff "
            f"{float(jnp.max(jnp.abs(out - ref))):.3e})")
    print("KERNEL_OK")
</pallas_src>

<mosaic_0001>
module attributes {stable_mosaic.version = 11 : i64} {
  func.func @posatt5_kernel(%arg0: i32, %arg1: memref<8x256xf32, #tpu.memory_space<vmem>>, %arg2: memref<8x256xf32, #tpu.memory_space<vmem>>, %arg3: memref<2x8xf32, #tpu.memory_space<vmem>>, %arg4: memref<2x8xf32, #tpu.memory_space<vmem>>, %arg5: memref<256x20xf32, #tpu.memory_space<vmem>>, %arg6: memref<1x20xf32, #tpu.memory_space<vmem>>, %arg7: memref<20x512xf32, #tpu.memory_space<vmem>>, %arg8: memref<1x512xf32, #tpu.memory_space<vmem>>, %arg9: memref<8x2xf32, #tpu.memory_space<vmem>>, %arg10: memref<8x256xf32, #tpu.memory_space<vmem>>) attributes {dimension_semantics = [#tpu.dimension_semantics<parallel>], iteration_bounds = array<i64: 1>, scalar_prefetch = 0 : i64, scratch_operands = 0 : i64, tpu.core_type = #tpu.core_type<tc>, window_params = [{transform_indices = @transform_0, window_bounds = array<i64: 8, 256>}, {transform_indices = @transform_1, window_bounds = array<i64: 8, 256>}, {pipeline_mode = #tpu.pipeline_mode<synchronous>, transform_indices = @transform_2, window_bounds = array<i64: 2, 8>}, {pipeline_mode = #tpu.pipeline_mode<synchronous>, transform_indices = @transform_3, window_bounds = array<i64: 2, 8>}, {pipeline_mode = #tpu.pipeline_mode<synchronous>, transform_indices = @transform_4, window_bounds = array<i64: 256, 20>}, {pipeline_mode = #tpu.pipeline_mode<synchronous>, transform_indices = @transform_5, window_bounds = array<i64: 1, 20>}, {pipeline_mode = #tpu.pipeline_mode<synchronous>, transform_indices = @transform_6, window_bounds = array<i64: 20, 512>}, {pipeline_mode = #tpu.pipeline_mode<synchronous>, transform_indices = @transform_7, window_bounds = array<i64: 1, 512>}, {pipeline_mode = #tpu.pipeline_mode<synchronous>, transform_indices = @transform_8, window_bounds = array<i64: 8, 2>}, {transform_indices = @transform_9, window_bounds = array<i64: 8, 256>}]} {
    %c0 = arith.constant 0 : index
    %c0_0 = arith.constant 0 : index
    %0 = vector.load %arg1[%c0, %c0_0] : memref<8x256xf32, #tpu.memory_space<vmem>>, vector<8x256xf32>
    %c0_1 = arith.constant 0 : index
    %c0_2 = arith.constant 0 : index
    %1 = vector.load %arg2[%c0_1, %c0_2] : memref<8x256xf32, #tpu.memory_space<vmem>>, vector<8x256xf32>
    %c0_3 = arith.constant 0 : index
    %c0_4 = arith.constant 0 : index
    %2 = vector.load %arg3[%c0_3, %c0_4] : memref<2x8xf32, #tpu.memory_space<vmem>>, vector<2x8xf32>
    %cst = arith.constant dense<0.000000e+00> : vector<2x256xf32>
    %3 = tpu.matmul %2, %0, %cst {dimension_numbers = #tpu.dot_dimension_numbers<[1], [0], [0], [1], [0, 0, 1, 1], [], []>} : vector<2x8xf32>, vector<8x256xf32>, vector<2x256xf32> -> vector<2x256xf32>
    %c0_5 = arith.constant 0 : index
    %c0_6 = arith.constant 0 : index
    %4 = vector.load %arg4[%c0_5, %c0_6] : memref<2x8xf32, #tpu.memory_space<vmem>>, vector<2x8xf32>
    %cst_7 = arith.constant dense<0.000000e+00> : vector<2x256xf32>
    %5 = tpu.matmul %4, %1, %cst_7 {dimension_numbers = #tpu.dot_dimension_numbers<[1], [0], [0], [1], [0, 0, 1, 1], [], []>} : vector<2x8xf32>, vector<8x256xf32>, vector<2x256xf32> -> vector<2x256xf32>
    %6 = arith.addf %3, %5 : vector<2x256xf32>
    %c0_8 = arith.constant 0 : index
    %c0_9 = arith.constant 0 : index
    %7 = vector.load %arg5[%c0_8, %c0_9] : memref<256x20xf32, #tpu.memory_space<vmem>>, vector<256x20xf32>
    %cst_10 = arith.constant dense<0.000000e+00> : vector<2x20xf32>
    %8 = tpu.matmul %6, %7, %cst_10 {dimension_numbers = #tpu.dot_dimension_numbers<[1], [0], [0], [1], [0, 0, 1, 1], [], []>} : vector<2x256xf32>, vector<256x20xf32>, vector<2x20xf32> -> vector<2x20xf32>
    %c0_11 = arith.constant 0 : index
    %c0_12 = arith.constant 0 : index
    %9 = vector.load %arg6[%c0_11, %c0_12] : memref<1x20xf32, #tpu.memory_space<vmem>>, vector<1x20xf32>
    %10 = vector.broadcast %9 : vector<1x20xf32> to vector<2x20xf32>
    %11 = arith.addf %8, %10 : vector<2x20xf32>
    %cst_13 = arith.constant 0.000000e+00 : f32
    %12 = vector.broadcast %cst_13 : f32 to vector<2x20xf32>
    %13 = arith.maximumf %11, %12 : vector<2x20xf32>
    %c0_14 = arith.constant 0 : index
    %c0_15 = arith.constant 0 : index
    %14 = vector.load %arg7[%c0_14, %c0_15] : memref<20x512xf32, #tpu.memory_space<vmem>>, vector<20x512xf32>
    %cst_16 = arith.constant dense<0.000000e+00> : vector<2x512xf32>
    %15 = tpu.matmul %13, %14, %cst_16 {dimension_numbers = #tpu.dot_dimension_numbers<[1], [0], [0], [1], [0, 0, 1, 1], [], []>} : vector<2x20xf32>, vector<20x512xf32>, vector<2x512xf32> -> vector<2x512xf32>
    %c0_17 = arith.constant 0 : index
    %c0_18 = arith.constant 0 : index
    %16 = vector.load %arg8[%c0_17, %c0_18] : memref<1x512xf32, #tpu.memory_space<vmem>>, vector<1x512xf32>
    %17 = vector.broadcast %16 : vector<1x512xf32> to vector<2x512xf32>
    %18 = arith.addf %15, %17 : vector<2x512xf32>
    %19 = vector.extract_strided_slice %18 {offsets = [0, 0], sizes = [2, 256], strides = [1, 1]} : vector<2x512xf32> to vector<2x256xf32>
    %20 = vector.extract_strided_slice %18 {offsets = [0, 256], sizes = [2, 256], strides = [1, 1]} : vector<2x512xf32> to vector<2x256xf32>
    %21 = arith.maximumf %19, %20 : vector<2x256xf32>
    %22 = arith.subf %19, %21 : vector<2x256xf32>
    %23 = math.exp %22 : vector<2x256xf32>
    %24 = arith.subf %20, %21 : vector<2x256xf32>
    %25 = math.exp %24 : vector<2x256xf32>
    %26 = arith.addf %23, %25 : vector<2x256xf32>
    %27 = tpu.reciprocal %26 {approx = true} : vector<2x256xf32> -> vector<2x256xf32>
    %28 = arith.mulf %23, %27 : vector<2x256xf32>
    %29 = arith.mulf %25, %27 : vector<2x256xf32>
    %c0_19 = arith.constant 0 : index
    %c0_20 = arith.constant 0 : index
    %30 = vector.load %arg9[%c0_19, %c0_20] : memref<8x2xf32, #tpu.memory_space<vmem>>, vector<8x2xf32>
    %cst_21 = arith.constant dense<0.000000e+00> : vector<8x256xf32>
    %31 = tpu.matmul %30, %28, %cst_21 {dimension_numbers = #tpu.dot_dimension_numbers<[1], [0], [0], [1], [0, 0, 1, 1], [], []>} : vector<8x2xf32>, vector<2x256xf32>, vector<8x256xf32> -> vector<8x256xf32>
    %c0_22 = arith.constant 0 : index
    %c0_23 = arith.constant 0 : index
    %32 = vector.load %arg9[%c0_22, %c0_23] : memref<8x2xf32, #tpu.memory_space<vmem>>, vector<8x2xf32>
    %cst_24 = arith.constant dense<0.000000e+00> : vector<8x256xf32>
    %33 = tpu.matmul %32, %29, %cst_24 {dimension_numbers = #tpu.dot_dimension_numbers<[1], [0], [0], [1], [0, 0, 1, 1], [], []>} : vector<8x2xf32>, vector<2x256xf32>, vector<8x256xf32> -> vector<8x256xf32>
    %34 = arith.mulf %0, %31 : vector<8x256xf32>
    %35 = arith.mulf %1, %33 : vector<8x256xf32>
    %36 = arith.addf %34, %35 : vector<8x256xf32>
    %c0_25 = arith.constant 0 : index
    %c0_26 = arith.constant 0 : index
    %37 = vector.load %arg10[%c0_25, %c0_26] : memref<8x256xf32, #tpu.memory_space<vmem>>, vector<8x256xf32>
    tpu.vector_store %arg10[%c0_25, %c0_26], %36 {strides = array<i32>} : memref<8x256xf32, #tpu.memory_space<vmem>>, vector<8x256xf32>,
    return
  }
  func.func @transform_0(%arg0: i32) -> (i32, i32) {
    %c0_i32 = arith.constant 0 : i32
    %c0_i32_0 = arith.constant 0 : i32
    return %arg0, %c0_i32 : i32, i32
  }
  func.func @transform_1(%arg0: i32) -> (i32, i32) {
    %c0_i32 = arith.constant 0 : i32
    %c0_i32_0 = arith.constant 0 : i32
    return %arg0, %c0_i32 : i32, i32
  }
  func.func @transform_2(%arg0: i32) -> (i32, i32) {
    %c0_i32 = arith.constant 0 : i32
    %c0_i32_0 = arith.constant 0 : i32
    %c0_i32_1 = arith.constant 0 : i32
    return %c0_i32, %c0_i32_0 : i32, i32
  }
  func.func @transform_3(%arg0: i32) -> (i32, i32) {
    %c0_i32 = arith.constant 0 : i32
    %c0_i32_0 = arith.constant 0 : i32
    %c0_i32_1 = arith.constant 0 : i32
    return %c0_i32, %c0_i32_0 : i32, i32
  }
  func.func @transform_4(%arg0: i32) -> (i32, i32) {
    %c0_i32 = arith.constant 0 : i32
    %c0_i32_0 = arith.constant 0 : i32
    %c0_i32_1 = arith.constant 0 : i32
    return %c0_i32, %c0_i32_0 : i32, i32
  }
  func.func @transform_5(%arg0: i32) -> (i32, i32) {
    %c0_i32 = arith.constant 0 : i32
    %c0_i32_0 = arith.constant 0 : i32
    %c0_i32_1 = arith.constant 0 : i32
    return %c0_i32, %c0_i32_0 : i32, i32
  }
  func.func @transform_6(%arg0: i32) -> (i32, i32) {
    %c0_i32 = arith.constant 0 : i32
    %c0_i32_0 = arith.constant 0 : i32
    %c0_i32_1 = arith.constant 0 : i32
    return %c0_i32, %c0_i32_0 : i32, i32
  }
  func.func @transform_7(%arg0: i32) -> (i32, i32) {
    %c0_i32 = arith.constant 0 : i32
    %c0_i32_0 = arith.constant 0 : i32
    %c0_i32_1 = arith.constant 0 : i32
    return %c0_i32, %c0_i32_0 : i32, i32
  }
  func.func @transform_8(%arg0: i32) -> (i32, i32) {
    %c0_i32 = arith.constant 0 : i32
    %c0_i32_0 = arith.constant 0 : i32
    %c0_i32_1 = arith.constant 0 : i32
    return %c0_i32, %c0_i32_0 : i32, i32
  }
  func.func @transform_9(%arg0: i32) -> (i32, i32) {
    %c0_i32 = arith.constant 0 : i32
    %c0_i32_0 = arith.constant 0 : i32
    return %arg0, %c0_i32 : i32, i32
  }
}

</mosaic_0001>

<llo_original>
// kernel: tpu_custom_call.1
$region0: #{tpu_custom_call.1}
  #allocation0 [shape = 'u32[]', space=smem, size = 0x4, offset = 0x4, fixed_abs, tag = 'smem constant byte address 0x4 - core index']
  #allocation1 [shape = 'u32[72,128]{1,0:T(1,128)}', space=vmem, size = 0x9000, scoped, tag = 'internal scratch']
  %s0 = inlined_call_operand.vmem [shape: f32[8,256], index: 0, kind: input, shape index: {}]
  %s1 = inlined_call_operand.vmem [shape: f32[8,256], index: 1, kind: input, shape index: {}]
  %s2 = inlined_call_operand.vmem [shape: f32[2,8], index: 2, kind: input, shape index: {}]
  %s3 = inlined_call_operand.vmem [shape: f32[2,8], index: 3, kind: input, shape index: {}]
  %s4 = inlined_call_operand.vmem [shape: f32[256,20], index: 4, kind: input, shape index: {}]
  %s5 = inlined_call_operand.vmem [shape: f32[1,20], index: 5, kind: input, shape index: {}]
  %s6 = inlined_call_operand.vmem [shape: f32[20,512], index: 6, kind: input, shape index: {}]
  %s7 = inlined_call_operand.vmem [shape: f32[1,512], index: 7, kind: input, shape index: {}]
  %s8 = inlined_call_operand.vmem [shape: f32[8,2], index: 8, kind: input, shape index: {}]
  %s9 = inlined_call_operand.hbm [shape: f32[8,256], index: 9, kind: output, shape index: {}]
  %s10 = sld [smem:[#allocation0]]
  $region46: #{tpu_custom_call.1} parent=0
    _
  %s12 = ssub.s32 1, %s10
  %s13 = scalar_select 0, %s12, %s10
  $region1: #{tpu_custom_call.1} parent=0
    #allocation2 [shape = 'u8[8192]{0}', space=vmem, size = 0x2000, scoped, tag = 'output window, operand 0, single buffered']
    #allocation3 [shape = 's32[1]{0}', space=sflag, size = 0x4, scoped, tag = 'scoped memory for tpu_custom_call.1']
    %14 = vsyncpa [#allocation3], 0
    // Predicated region
    $region2: #{tpu_custom_call.1} parent=1 // pred_check
      _
    $region3: #{tpu_custom_call.1} parent=1 // pred_check_branch
      %16 = sbr.rel (0) target = $region5
    $region4: #{tpu_custom_call.1} parent=1 // pred_region
      _
    $region5: #{tpu_custom_call.1} parent=1 // pred_fallthru
      _
    // Predicated region
    $region6: #{tpu_custom_call.1} parent=1 // pred_check
      _
    $region7: #{tpu_custom_call.1} parent=1 // pred_check_branch
      %18 = sbr.rel (0) target = $region9
    $region8: #{tpu_custom_call.1} parent=1 // pred_region
      _
    $region9: #{tpu_custom_call.1} parent=1 // pred_fallthru
      _
    // Predicated region
    $region10: #{tpu_custom_call.1} parent=1 // pred_check
      _
    $region11: #{tpu_custom_call.1} parent=1 // pred_check_branch
      %20 = sbr.rel (0) target = $region13
    $region12: #{tpu_custom_call.1} parent=1 // pred_region
      _
    $region13: #{tpu_custom_call.1} parent=1 // pred_fallthru
      _
    // Predicated region
    $region14: #{tpu_custom_call.1} parent=1 // pred_check
      _
    $region15: #{tpu_custom_call.1} parent=1 // pred_check_branch
      %22 = sbr.rel (0) target = $region17
    $region16: #{tpu_custom_call.1} parent=1 // pred_region
      _
    $region17: #{tpu_custom_call.1} parent=1 // pred_fallthru
      _
    // Predicated region
    $region18: #{tpu_custom_call.1} parent=1 // pred_check
      _
    $region19: #{tpu_custom_call.1} parent=1 // pred_check_branch
      %24 = sbr.rel (0) target = $region21
    $region20: #{tpu_custom_call.1} parent=1 // pred_region
      _
    $region21: #{tpu_custom_call.1} parent=1 // pred_fallthru
      _
    // Predicated region
    $region22: #{tpu_custom_call.1} parent=1 // pred_check
      _
    $region23: #{tpu_custom_call.1} parent=1 // pred_check_branch
      %26 = sbr.rel (0) target = $region25
    $region24: #{tpu_custom_call.1} parent=1 // pred_region
      _
    $region25: #{tpu_custom_call.1} parent=1 // pred_fallthru
      _
    // Predicated region
    $region26: #{tpu_custom_call.1} parent=1 // pred_check
      _
    $region27: #{tpu_custom_call.1} parent=1 // pred_check_branch
      %28 = sbr.rel (0) target = $region29
    $region28: #{tpu_custom_call.1} parent=1 // pred_region
      _
    $region29: #{tpu_custom_call.1} parent=1 // pred_fallthru
      _
    // Predicated region
    $region30: #{tpu_custom_call.1} parent=1 // pred_check
      _
    $region31: #{tpu_custom_call.1} parent=1 // pred_check_branch
      %30 = sbr.rel (0) target = $region33
    $region32: #{tpu_custom_call.1} parent=1 // pred_region
      _
    $region33: #{tpu_custom_call.1} parent=1 // pred_fallthru
      _
    // Predicated region
    $region34: #{tpu_custom_call.1} parent=1 // pred_check
      _
    $region35: #{tpu_custom_call.1} parent=1 // pred_check_branch
      %32 = sbr.rel (0) target = $region37
    $region36: #{tpu_custom_call.1} parent=1 // pred_region
      _
    $region37: #{tpu_custom_call.1} parent=1 // pred_fallthru
      _
    %v33 = vld [vmem:[%s0] sm:$0xff]
    %v34 = vld [vmem:[%s0 + $0x8] sm:$0xff]
    %v35 = vld [vmem:[%s1] sm:$0xff]
    %v36 = vld [vmem:[%s1 + $0x8] sm:$0xff]
    %v37 = vld [vmem:[%s2] sm:$0x3]
    %v38 = vld [vmem:[%s3] sm:$0x3]
    %vm39 = vcmask 64512
    %v41 = vsel %vm39, %v38, 0
    %43 = vmatpush.msra.mxu0 0.0
    %44 = vmatpush.msra.mxu0 0.0
    %45 = vmatpush.msra.mxu0 0.0
    %46 = vmatpush.msra.mxu0 0.0
    %47 = vmatpush.msra.mxu0 0.0
    %48 = vmatpush.msra.mxu0 0.0
    %49 = vmatpush.msra.mxu0 0.0
    %50 = vmatpush.msra.mxu0 0.0
    %51 = vmatpush.msra.mxu0 0.0
    %52 = vmatpush.msra.mxu0 0.0
    %53 = vmatpush.msra.mxu0 0.0
    %54 = vmatpush.msra.mxu0 0.0
    %55 = vmatpush.msra.mxu0 0.0
    %56 = vmatpush.msra.mxu0 0.0
    %57 = vmatpush.msra.mxu0 0.0
    %58 = vmatpush.msra.mxu0 %v35
    %59 = vmatmul.f32.gmra.mxu0 %v41
    %v60 = vpop.f32.mrf.mxu0
    %v61 = vadd.f32 0.0, %v60
    %62 = vdwg.mxu0
    %63 = vmatpush.msra.mxu0 0.0
    %64 = vmatpush.msra.mxu0 0.0
    %65 = vmatpush.msra.mxu0 0.0
    %66 = vmatpush.msra.mxu0 0.0
    %67 = vmatpush.msra.mxu0 0.0
    %68 = vmatpush.msra.mxu0 0.0
    %69 = vmatpush.msra.mxu0 0.0
    %70 = vmatpush.msra.mxu0 0.0
    %71 = vmatpush.msra.mxu0 0.0
    %72 = vmatpush.msra.mxu0 0.0
    %73 = vmatpush.msra.mxu0 0.0
    %74 = vmatpush.msra.mxu0 0.0
    %75 = vmatpush.msra.mxu0 0.0
    %76 = vmatpush.msra.mxu0 0.0
    %77 = vmatpush.msra.mxu0 0.0
    %78 = vmatpush.msra.mxu0 %v36
    %79 = vmatmul.f32.gmra.mxu0 %v41
    %v80 = vpop.f32.mrf.mxu0
    %v81 = vadd.f32 0.0, %v80
    %82 = vdwg.mxu0
    %v84 = vsel %vm39, %v37, 0
    %86 = vmatpush.msra.mxu0 0.0
    %87 = vmatpush.msra.mxu0 0.0
    %88 = vmatpush.msra.mxu0 0.0
    %89 = vmatpush.msra.mxu0 0.0
    %90 = vmatpush.msra.mxu0 0.0
    %91 = vmatpush.msra.mxu0 0.0
    %92 = vmatpush.msra.mxu0 0.0
    %93 = vmatpush.msra.mxu0 0.0
    %94 = vmatpush.msra.mxu0 0.0
    %95 = vmatpush.msra.mxu0 0.0
    %96 = vmatpush.msra.mxu0 0.0
    %97 = vmatpush.msra.mxu0 0.0
    %98 = vmatpush.msra.mxu0 0.0
    %99 = vmatpush.msra.mxu0 0.0
    %100 = vmatpush.msra.mxu0 0.0
    %101 = vmatpush.msra.mxu0 %v33
    %102 = vmatmul.f32.gmra.mxu0 %v84
    %v103 = vpop.f32.mrf.mxu0
    %v104 = vadd.f32 %v61, %v103
    %105 = vdwg.mxu0
    %106 = vmatpush.msra.mxu0 0.0
    %107 = vmatpush.msra.mxu0 0.0
    %108 = vmatpush.msra.mxu0 0.0
    %109 = vmatpush.msra.mxu0 0.0
    %110 = vmatpush.msra.mxu0 0.0
    %111 = vmatpush.msra.mxu0 0.0
    %112 = vmatpush.msra.mxu0 0.0
    %113 = vmatpush.msra.mxu0 0.0
    %114 = vmatpush.msra.mxu0 0.0
    %115 = vmatpush.msra.mxu0 0.0
    %116 = vmatpush.msra.mxu0 0.0
    %117 = vmatpush.msra.mxu0 0.0
    %118 = vmatpush.msra.mxu0 0.0
    %119 = vmatpush.msra.mxu0 0.0
    %120 = vmatpush.msra.mxu0 0.0
    %121 = vmatpush.msra.mxu0 %v34
    %122 = vmatmul.f32.gmra.mxu0 %v84
    %v123 = vpop.f32.mrf.mxu0
    %v124 = vadd.f32 %v81, %v123
    %125 = vdwg.mxu0
    %v126 = vld [vmem:[%s4] sm:$0xff]
    %v127 = vld [vmem:[%s4 + $0x8] sm:$0xff]
    %v128 = vld [vmem:[%s4 + $0x10] sm:$0xff]
    %v129 = vld [vmem:[%s4 + $0x18] sm:$0xff]
    %v130 = vld [vmem:[%s4 + $0x20] sm:$0xff]
    %v131 = vld [vmem:[%s4 + $0x28] sm:$0xff]
    %v132 = vld [vmem:[%s4 + $0x30] sm:$0xff]
    %v133 = vld [vmem:[%s4 + $0x38] sm:$0xff]
    %v134 = vld [vmem:[%s4 + $0x40] sm:$0xff]
    %v135 = vld [vmem:[%s4 + $0x48] sm:$0xff]
    %v136 = vld [vmem:[%s4 + $0x50] sm:$0xff]
    %v137 = vld [vmem:[%s4 + $0x58] sm:$0xff]
    %v138 = vld [vmem:[%s4 + $0x60] sm:$0xff]
    %v139 = vld [vmem:[%s4 + $0x68] sm:$0xff]
    %v140 = vld [vmem:[%s4 + $0x70] sm:$0xff]
    %v141 = vld [vmem:[%s4 + $0x78] sm:$0xff]
    %v142 = vld [vmem:[%s4 + $0x80] sm:$0xff]
    %v143 = vld [vmem:[%s4 + $0x88] sm:$0xff]
    %v144 = vld [vmem:[%s4 + $0x90] sm:$0xff]
    %v145 = vld [vmem:[%s4 + $0x98] sm:$0xff]
    %v146 = vld [vmem:[%s4 + $0xa0] sm:$0xff]
    %v147 = vld [vmem:[%s4 + $0xa8] sm:$0xff]
    %v148 = vld [vmem:[%s4 + $0xb0] sm:$0xff]
    %v149 = vld [vmem:[%s4 + $0xb8] sm:$0xff]
    %v150 = vld [vmem:[%s4 + $0xc0] sm:$0xff]
    %v151 = vld [vmem:[%s4 + $0xc8] sm:$0xff]
    %v152 = vld [vmem:[%s4 + $0xd0] sm:$0xff]
    %v153 = vld [vmem:[%s4 + $0xd8] sm:$0xff]
    %v154 = vld [vmem:[%s4 + $0xe0] sm:$0xff]
    %v155 = vld [vmem:[%s4 + $0xe8] sm:$0xff]
    %v156 = vld [vmem:[%s4 + $0xf0] sm:$0xff]
    %v157 = vld [vmem:[%s4 + $0xf8] sm:$0xff]
    %v158 = vld [vmem:[%s5] sm:$0x1]
    %v160 = vperm.slane %v158, 0
    %162 = vmatpush.msra.mxu0 %v141
    %163 = vmatpush.msra.mxu0 %v140
    %164 = vmatpush.msra.mxu0 %v139
    %165 = vmatpush.msra.mxu0 %v138
    %166 = vmatpush.msra.mxu0 %v137
    %167 = vmatpush.msra.mxu0 %v136
    %168 = vmatpush.msra.mxu0 %v135
    %169 = vmatpush.msra.mxu0 %v134
    %170 = vmatpush.msra.mxu0 %v133
    %171 = vmatpush.msra.mxu0 %v132
    %172 = vmatpush.msra.mxu0 %v131
    %173 = vmatpush.msra.mxu0 %v130
    %174 = vmatpush.msra.mxu0 %v129
    %175 = vmatpush.msra.mxu0 %v128
    %176 = vmatpush.msra.mxu0 %v127
    %177 = vmatpush.msra.mxu0 %v126
    %178 = vmatmul.f32.gmra.mxu0 %v104
    %v179 = vpop.f32.mrf.mxu0
    %v180 = vadd.f32 %v160, %v179
    %181 = vdwg.mxu0
    %182 = vmatpush.msra.mxu0 %v157
    %183 = vmatpush.msra.mxu0 %v156
    %184 = vmatpush.msra.mxu0 %v155
    %185 = vmatpush.msra.mxu0 %v154
    %186 = vmatpush.msra.mxu0 %v153
    %187 = vmatpush.msra.mxu0 %v152
    %188 = vmatpush.msra.mxu0 %v151
    %189 = vmatpush.msra.mxu0 %v150
    %190 = vmatpush.msra.mxu0 %v149
    %191 = vmatpush.msra.mxu0 %v148
    %192 = vmatpush.msra.mxu0 %v147
    %193 = vmatpush.msra.mxu0 %v146
    %194 = vmatpush.msra.mxu0 %v145
    %195 = vmatpush.msra.mxu0 %v144
    %196 = vmatpush.msra.mxu0 %v143
    %197 = vmatpush.msra.mxu0 %v142
    %198 = vmatmul.f32.gmra.mxu0 %v124
    %v199 = vpop.f32.mrf.mxu0
    %v200 = vadd.f32 %v180, %v199
    %201 = vdwg.mxu0
    %v202 = vmax.f32 %v200, 0.0
    %v203 = vld [vmem:[%s6] sm:$0xff]
    %v204 = vld [vmem:[%s6 + $0x8] sm:$0xff]
    %v205 = vld [vmem:[%s6 + $0x10] sm:$0xff]
    %v206 = vld [vmem:[%s6 + $0x18] sm:$0xff]
    %v207 = vld [vmem:[%s6 + $0x20] sm:$0xff]
    %v208 = vld [vmem:[%s6 + $0x28] sm:$0xff]
    %v209 = vld [vmem:[%s6 + $0x30] sm:$0xff]
    %v210 = vld [vmem:[%s6 + $0x38] sm:$0xff]
    %v211 = vld [vmem:[%s6 + $0x40] sm:$0xf]
    %v212 = vld [vmem:[%s6 + $0x48] sm:$0xf]
    %v213 = vld [vmem:[%s6 + $0x50] sm:$0xf]
    %v214 = vld [vmem:[%s6 + $0x58] sm:$0xf]
    %v215 = vld [vmem:[%s7] sm:$0xf]
    %v217 = vperm.slane %v215, 0
    %v218 = vperm.slane %v215, 1
    %v219 = vperm.slane %v215, 2
    %v220 = vperm.slane %v215, 3
    %vm225 = vcmask 162816
    %v227 = vsel %vm225, %v202, 0
    %vm229 = vcmask 1043456
    %v231 = vsel %vm229, %v211, 0
    %v234 = vsel %vm229, %v212, 0
    %v237 = vsel %vm229, %v213, 0
    %v240 = vsel %vm229, %v214, 0
    %242 = vmatpush.msra.mxu0 0.0
    %243 = vmatpush.msra.mxu0 0.0
    %244 = vmatpush.msra.mxu0 0.0
    %245 = vmatpush.msra.mxu0 0.0
    %246 = vmatpush.msra.mxu0 0.0
    %247 = vmatpush.msra.mxu0 0.0
    %248 = vmatpush.msra.mxu0 0.0
    %249 = vmatpush.msra.mxu0 0.0
    %250 = vmatpush.msra.mxu0 0.0
    %251 = vmatpush.msra.mxu0 0.0
    %252 = vmatpush.msra.mxu0 0.0
    %253 = vmatpush.msra.mxu0 0.0
    %254 = vmatpush.msra.mxu0 0.0
    %255 = vmatpush.msra.mxu0 %v231
    %256 = vmatpush.msra.mxu0 %v207
    %257 = vmatpush.msra.mxu0 %v203
    %258 = vmatmul.f32.gmra.mxu0 %v227
    %v259 = vpop.f32.mrf.mxu0
    %v260 = vadd.f32 %v217, %v259
    %261 = vdwg.mxu0
    %262 = vmatpush.msra.mxu0 0.0
    %263 = vmatpush.msra.mxu0 0.0
    %264 = vmatpush.msra.mxu0 0.0
    %265 = vmatpush.msra.mxu0 0.0
    %266 = vmatpush.msra.mxu0 0.0
    %267 = vmatpush.msra.mxu0 0.0
    %268 = vmatpush.msra.mxu0 0.0
    %269 = vmatpush.msra.mxu0 0.0
    %270 = vmatpush.msra.mxu0 0.0
    %271 = vmatpush.msra.mxu0 0.0
    %272 = vmatpush.msra.mxu0 0.0
    %273 = vmatpush.msra.mxu0 0.0
    %274 = vmatpush.msra.mxu0 0.0
    %275 = vmatpush.msra.mxu0 %v234
    %276 = vmatpush.msra.mxu0 %v208
    %277 = vmatpush.msra.mxu0 %v204
    %278 = vmatmul.f32.gmra.mxu0 %v227
    %v279 = vpop.f32.mrf.mxu0
    %v280 = vadd.f32 %v218, %v279
    %281 = vdwg.mxu0
    %282 = vmatpush.msra.mxu0 0.0
    %283 = vmatpush.msra.mxu0 0.0
    %284 = vmatpush.msra.mxu0 0.0
    %285 = vmatpush.msra.mxu0 0.0
    %286 = vmatpush.msra.mxu0 0.0
    %287 = vmatpush.msra.mxu0 0.0
    %288 = vmatpush.msra.mxu0 0.0
    %289 = vmatpush.msra.mxu0 0.0
    %290 = vmatpush.msra.mxu0 0.0
    %291 = vmatpush.msra.mxu0 0.0
    %292 = vmatpush.msra.mxu0 0.0
    %293 = vmatpush.msra.mxu0 0.0
    %294 = vmatpush.msra.mxu0 0.0
    %295 = vmatpush.msra.mxu0 %v237
    %296 = vmatpush.msra.mxu0 %v209
    %297 = vmatpush.msra.mxu0 %v205
    %298 = vmatmul.f32.gmra.mxu0 %v227
    %v299 = vpop.f32.mrf.mxu0
    %v300 = vadd.f32 %v219, %v299
    %301 = vdwg.mxu0
    %302 = vmatpush.msra.mxu0 0.0
    %303 = vmatpush.msra.mxu0 0.0
    %304 = vmatpush.msra.mxu0 0.0
    %305 = vmatpush.msra.mxu0 0.0
    %306 = vmatpush.msra.mxu0 0.0
    %307 = vmatpush.msra.mxu0 0.0
    %308 = vmatpush.msra.mxu0 0.0
    %309 = vmatpush.msra.mxu0 0.0
    %310 = vmatpush.msra.mxu0 0.0
    %311 = vmatpush.msra.mxu0 0.0
    %312 = vmatpush.msra.mxu0 0.0
    %313 = vmatpush.msra.mxu0 0.0
    %314 = vmatpush.msra.mxu0 0.0
    %315 = vmatpush.msra.mxu0 %v240
    %316 = vmatpush.msra.mxu0 %v210
    %317 = vmatpush.msra.mxu0 %v206
    %318 = vmatmul.f32.gmra.mxu0 %v227
    %v319 = vpop.f32.mrf.mxu0
    %v320 = vadd.f32 %v220, %v319
    %321 = vdwg.mxu0
    %v322 = vmax.f32 %v260, %v300
    %v323 = vmax.f32 %v280, %v320
    %v324 = vsub.f32 %v260, %v322
    %v325 = vsub.f32 %v280, %v323
    %v326 = vmul.f32 %v324, 1.442695
    %v327 = vpow.pop %v326
    %v328 = vmul.f32 %v325, 1.442695
    %v329 = vpow.pop %v328
    %v330 = vsub.f32 %v300, %v322
    %v331 = vsub.f32 %v320, %v323
    %v332 = vmul.f32 %v330, 1.442695
    %v333 = vpow.pop %v332
    %v334 = vmul.f32 %v331, 1.442695
    %v335 = vpow.pop %v334
    %v336 = vadd.f32 %v327, %v333
    %v337 = vadd.f32 %v329, %v335
    %v338 = vrcp.pop %v336
    %v339 = vrcp.pop %v337
    %v340 = vmul.f32 %v327, %v338
    %v341 = vmul.f32 %v329, %v339
    %v342 = vmul.f32 %v333, %v338
    %v343 = vmul.f32 %v335, %v339
    %v344 = vld [vmem:[%s8] sm:$0xff]
    %vm345 = vcmask 15360
    %v347 = vsel %vm345, %v344, 0
    %vm349 = vcmask 1041408
    %v351 = vsel %vm349, %v340, 0
    %v354 = vsel %vm349, %v341, 0
    %356 = vmatpush.msra.mxu0 0.0
    %357 = vmatpush.msra.mxu0 0.0
    %358 = vmatpush.msra.mxu0 0.0
    %359 = vmatpush.msra.mxu0 0.0
    %360 = vmatpush.msra.mxu0 0.0
    %361 = vmatpush.msra.mxu0 0.0
    %362 = vmatpush.msra.mxu0 0.0
    %363 = vmatpush.msra.mxu0 0.0
    %364 = vmatpush.msra.mxu0 0.0
    %365 = vmatpush.msra.mxu0 0.0
    %366 = vmatpush.msra.mxu0 0.0
    %367 = vmatpush.msra.mxu0 0.0
    %368 = vmatpush.msra.mxu0 0.0
    %369 = vmatpush.msra.mxu0 0.0
    %370 = vmatpush.msra.mxu0 0.0
    %371 = vmatpush.msra.mxu0 %v351
    %372 = vmatmul.f32.gmra.mxu0 %v347
    %v373 = vpop.f32.mrf.mxu0
    %v374 = vadd.f32 0.0, %v373
    %375 = vdwg.mxu0
    %376 = vmatpush.msra.mxu0 0.0
    %377 = vmatpush.msra.mxu0 0.0
    %378 = vmatpush.msra.mxu0 0.0
    %379 = vmatpush.msra.mxu0 0.0
    %380 = vmatpush.msra.mxu0 0.0
    %381 = vmatpush.msra.mxu0 0.0
    %382 = vmatpush.msra.mxu0 0.0
    %383 = vmatpush.msra.mxu0 0.0
    %384 = vmatpush.msra.mxu0 0.0
    %385 = vmatpush.msra.mxu0 0.0
    %386 = vmatpush.msra.mxu0 0.0
    %387 = vmatpush.msra.mxu0 0.0
    %388 = vmatpush.msra.mxu0 0.0
    %389 = vmatpush.msra.mxu0 0.0
    %390 = vmatpush.msra.mxu0 0.0
    %391 = vmatpush.msra.mxu0 %v354
    %392 = vmatmul.f32.gmra.mxu0 %v347
    %v393 = vpop.f32.mrf.mxu0
    %v394 = vadd.f32 0.0, %v393
    %395 = vdwg.mxu0
    %v397 = vsel %vm349, %v342, 0
    %v400 = vsel %vm349, %v343, 0
    %402 = vmatpush.msra.mxu0 0.0
    %403 = vmatpush.msra.mxu0 0.0
    %404 = vmatpush.msra.mxu0 0.0
    %405 = vmatpush.msra.mxu0 0.0
    %406 = vmatpush.msra.mxu0 0.0
    %407 = vmatpush.msra.mxu0 0.0
    %408 = vmatpush.msra.mxu0 0.0
    %409 = vmatpush.msra.mxu0 0.0
    %410 = vmatpush.msra.mxu0 0.0
    %411 = vmatpush.msra.mxu0 0.0
    %412 = vmatpush.msra.mxu0 0.0
    %413 = vmatpush.msra.mxu0 0.0
    %414 = vmatpush.msra.mxu0 0.0
    %415 = vmatpush.msra.mxu0 0.0
    %416 = vmatpush.msra.mxu0 0.0
    %417 = vmatpush.msra.mxu0 %v397
    %418 = vmatmul.f32.gmra.mxu0 %v347
    %v419 = vpop.f32.mrf.mxu0
    %v420 = vadd.f32 0.0, %v419
    %421 = vdwg.mxu0
    %422 = vmatpush.msra.mxu0 0.0
    %423 = vmatpush.msra.mxu0 0.0
    %424 = vmatpush.msra.mxu0 0.0
    %425 = vmatpush.msra.mxu0 0.0
    %426 = vmatpush.msra.mxu0 0.0
    %427 = vmatpush.msra.mxu0 0.0
    %428 = vmatpush.msra.mxu0 0.0
    %429 = vmatpush.msra.mxu0 0.0
    %430 = vmatpush.msra.mxu0 0.0
    %431 = vmatpush.msra.mxu0 0.0
    %432 = vmatpush.msra.mxu0 0.0
    %433 = vmatpush.msra.mxu0 0.0
    %434 = vmatpush.msra.mxu0 0.0
    %435 = vmatpush.msra.mxu0 0.0
    %436 = vmatpush.msra.mxu0 0.0
    %437 = vmatpush.msra.mxu0 %v400
    %438 = vmatmul.f32.gmra.mxu0 %v347
    %v439 = vpop.f32.mrf.mxu0
    %v440 = vadd.f32 0.0, %v439
    %441 = vdwg.mxu0
    %v442 = vmul.f32 %v33, %v374
    %v443 = vmul.f32 %v34, %v394
    %v444 = vmul.f32 %v35, %v420
    %v445 = vmul.f32 %v36, %v440
    %v446 = vadd.f32 %v442, %v444
    %v447 = vadd.f32 %v443, %v445
    %448 = vst [vmem:[#allocation2] sm:$0xff] %v446
    %449 = vst [vmem:[#allocation2 + $0x8] sm:$0xff] %v447
    // Predicated region
    $region38: #{tpu_custom_call.1} parent=1 // pred_check
      _
    $region39: #{tpu_custom_call.1} parent=1 // pred_check_branch
      %451 = sbr.rel (0) target = $region41
    $region40: #{tpu_custom_call.1} parent=1 // pred_region
      %453 = vsyncadd [#allocation3], 0
      %s455 = sshll.u32 [#allocation2], 4
      %s456 = int_to_ptr.vmem [resolvable:$true] %s455
      %s457 = sshll.u32 %s9, 4
      %s458 = int_to_ptr.hbm [resolvable:$true] %s457
      %460 = dma.vmem_to_hbm [thread:$0]  %s456, 256, %s458, [#allocation3]
    $region41: #{tpu_custom_call.1} parent=1 // pred_fallthru
      _
    // Predicated region
    $region42: #{tpu_custom_call.1} parent=1 // pred_check
      _
    $region43: #{tpu_custom_call.1} parent=1 // pred_check_branch
      %462 = sbr.rel (0) target = $region45
    $region44: #{tpu_custom_call.1} parent=1 // pred_region
      %464 = dma.done [#allocation3], 256
    $region45: #{tpu_custom_call.1} parent=1 // pred_fallthru
      _
    %465 = vsyncpa [#allocation3], 1

</llo_original>
